<compile_context>
chip_gen: v7x
topology: tpu7x:2x2x1
jax: 0.10.0
libtpu: 0.0.40
codegen_flags: <defaults>
</compile_context>

<pallas_src>
import functools

import jax
import jax.numpy as jnp
from jax.experimental import pallas as pl
from jax.experimental.pallas import tpu as pltpu


def _round_up(x, m):
    return (x + m - 1) // m * m


def _vmem_capacity_bytes():
    """Physical VMEM per TensorCore; conservative fallback if query fails."""
    try:
        return int(pltpu.get_tpu_info().vmem_capacity_bytes)
    except Exception:
        return 64 * 1024 * 1024  # v7x-sized fallback (safe everywhere)


def _choose_tile_b(B, E_pad, tile_b):
    """Batch tile: big when E_pad is small (mem-bound), but always leave
    >= 2 grid tiles when B allows so the parallel axis shards across v7x's
    two TensorCores."""
    if tile_b is None:
        if E_pad <= 256:
            tile_b = 2048
        elif E_pad <= 512:
            tile_b = 1024
        else:
            tile_b = 512
    half = max(8, _round_up(-(-B // 2), 8))  # ceil(B/2), sublane-aligned
    return max(8, min(tile_b, half))


def mlp_combiner_kernel(x_ref, w1t_ref, b1_ref, w2t_ref, b2_ref, out_ref):
    # linear1: single K = 2*E_pad matmul on the virtually-concatenated input,
    # f32 MXU accumulation; bias-add + tanh in f32.
    h = jnp.dot(x_ref[...], w1t_ref[...], preferred_element_type=jnp.float32)
    h = jnp.tanh(h + b1_ref[...])                        # (TILE_B, E_pad) f32
    # linear2
    out = jnp.dot(h.astype(w2t_ref.dtype), w2t_ref[...],
                  preferred_element_type=jnp.float32)
    out_ref[...] = (out + b2_ref[...]).astype(out_ref.dtype)


def prepare_params(params, embedding_dim, compute_dtype=jnp.bfloat16):
    """One-time preprocessing (hoisted out of the per-call path):
    transpose W1/W2, cast to the compute dtype, and zero-pad to lane-aligned
    shapes.  W1.T rows are laid out to match the fused-concat activation slab:
    rows [0:E] multiply the head columns, rows [E_pad:E_pad+E] the modifier
    columns; padded rows/cols are zero so they contribute exactly 0."""
    E = embedding_dim
    E_pad = _round_up(E, 128)

    w1t = params["w1"].T.astype(compute_dtype)           # (2E, E)
    w2t = params["w2"].T.astype(compute_dtype)           # (E, E)

    w1t_pad = jnp.zeros((2 * E_pad, E_pad), compute_dtype)
    w1t_pad = w1t_pad.at[:E, :E].set(w1t[:E, :])                    # head half
    w1t_pad = w1t_pad.at[E_pad:E_pad + E, :E].set(w1t[E:, :])       # modifier half

    w2t_pad = jnp.zeros((E_pad, E_pad), compute_dtype)
    w2t_pad = w2t_pad.at[:E, :E].set(w2t)

    def pad_bias(b):
        out = jnp.zeros((1, E_pad), jnp.float32)
        return out.at[0, :E].set(b.astype(jnp.float32))

    return {
        "w1t": w1t_pad,                 # (2*E_pad, E_pad)
        "w2t": w2t_pad,                 # (E_pad, E_pad)
        "b1": pad_bias(params["b1"]),   # (1, E_pad) f32 (padded cols -> tanh(0)=0)
        "b2": pad_bias(params["b2"]),   # (1, E_pad) f32
        "embedding_dim": E,
    }


@functools.partial(jax.jit, static_argnames=("tile_b", "out_dtype"))
def mlp_combiner_forward(head_embed, modifier_embed, prep, tile_b=None,
                         out_dtype=None):
    """head_embed, modifier_embed: (B, E).  Returns (B, E) in `out_dtype`
    (default: the input dtype)."""
    B, E = head_embed.shape
    two_E_pad, E_pad = prep["w1t"].shape
    cdt = prep["w1t"].dtype
    if out_dtype is None:
        out_dtype = head_embed.dtype
    out_bytes = jnp.dtype(out_dtype).itemsize

    TILE_B = _choose_tile_b(B, E_pad, tile_b)
    B_pad = _round_up(B, TILE_B)
    nb = B_pad // TILE_B

    # Fused concat + pad + cast: one activation slab, head in [:, 0:E],
    # modifier in [:, E_pad:E_pad+E].  Fast path when no padding is needed.
    if E == E_pad and B == B_pad:
        x_p = jnp.concatenate(
            [head_embed.astype(cdt), modifier_embed.astype(cdt)], axis=-1)
    else:
        x_p = jnp.zeros((B_pad, 2 * E_pad), cdt)
        x_p = x_p.at[:B, :E].set(head_embed.astype(cdt))
        x_p = x_p.at[:B, E_pad:E_pad + E].set(modifier_embed.astype(cdt))

    # Advisory cost hint for the XLA scheduler around the custom call.
    cost = pl.CostEstimate(
        flops=2 * B_pad * (2 * E_pad) * E_pad + 2 * B_pad * E_pad * E_pad,
        transcendentals=B_pad * E_pad,
        bytes_accessed=(B_pad * 2 * E_pad * 2        # activation slab (bf16)
                        + 3 * E_pad * E_pad * 2      # weights (bf16)
                        + 2 * E_pad * 4              # biases (f32)
                        + B_pad * E_pad * out_bytes  # output
                        ),
    )

    # VMEM budget: single-buffered resident weights, double-buffered
    # activation/output tiles, plus the implicit f32 intermediates.
    vmem_need = (
        3 * E_pad * E_pad * 2                 # W1.T (2E_pad x E_pad) + W2.T, bf16
        + 2 * 2 * E_pad * 4                   # biases (f32)
        + 2 * TILE_B * (2 * E_pad) * 2        # activation tile, double-buffered
        + 2 * TILE_B * E_pad * out_bytes      # output tile, double-buffered
        + 3 * TILE_B * E_pad * 4              # f32 intermediates (h, dots)
    )
    cap = max(48 * 1024 * 1024, int(0.85 * _vmem_capacity_bytes()))
    vmem_limit = int(min(max(int(1.25 * vmem_need), 32 * 1024 * 1024), cap))

    resident = dict(pipeline_mode=pl.Buffered(1))   # constant index_map -> 1 buffer

    out_pad = pl.pallas_call(
        mlp_combiner_kernel,
        out_shape=jax.ShapeDtypeStruct((B_pad, E_pad), out_dtype),
        grid_spec=pltpu.PrefetchScalarGridSpec(
            num_scalar_prefetch=0,
            grid=(nb,),
            in_specs=[
                pl.BlockSpec((TILE_B, 2 * E_pad), lambda i: (i, 0)),     # x tile
                pl.BlockSpec((2 * E_pad, E_pad), lambda i: (0, 0), **resident),  # W1.T
                pl.BlockSpec((1, E_pad), lambda i: (0, 0), **resident),          # b1
                pl.BlockSpec((E_pad, E_pad), lambda i: (0, 0), **resident),      # W2.T
                pl.BlockSpec((1, E_pad), lambda i: (0, 0), **resident),          # b2
            ],
            out_specs=pl.BlockSpec((TILE_B, E_pad), lambda i: (i, 0)),
        ),
        compiler_params=pltpu.CompilerParams(
            dimension_semantics=("parallel",),
            vmem_limit_bytes=vmem_limit,
        ),
        cost_estimate=cost,
    )(x_p, prep["w1t"], prep["b1"], prep["w2t"], prep["b2"])

    if B == B_pad and E == E_pad:
        return out_pad
    return out_pad[:B, :E]


def init_params(key, embedding_dim):
    """Deterministic init matching nn.Linear shapes (W: (out, in), b: (out,))."""
    k1, k2, k3, k4 = jax.random.split(key, 4)
    E = embedding_dim
    bound1 = 1.0 / jnp.sqrt(2.0 * E)
    bound2 = 1.0 / jnp.sqrt(float(E))
    return {
        "w1": jax.random.uniform(k1, (E, 2 * E), jnp.float32, -bound1, bound1),
        "b1": jax.random.uniform(k2, (E,), jnp.float32, -bound1, bound1),
        "w2": jax.random.uniform(k3, (E, E), jnp.float32, -bound2, bound2),
        "b2": jax.random.uniform(k4, (E,), jnp.float32, -bound2, bound2),
    }


def reference_forward(head_embed, modifier_embed, params):
    embeds = jnp.concatenate([head_embed, modifier_embed], axis=-1)   # (B, 2E)
    out = jnp.tanh(embeds @ params["w1"].T + params["b1"])
    return out @ params["w2"].T + params["b2"]


if __name__ == "__main__":
    B, E = 2, 32
    key = jax.random.PRNGKey(0)
    kh, km, kp = jax.random.split(key, 3)

    head = jax.random.normal(kh, (B, E), jnp.float32)
    mod = jax.random.normal(km, (B, E), jnp.float32)
    params = init_params(kp, E)

    prep = prepare_params(params, E)          # one-time, outside the hot path
    out = mlp_combiner_forward(head, mod, prep)
    out = jax.block_until_ready(out)

    ref = reference_forward(head, mod, params)
    assert out.shape == (B, E)
    max_err = float(jnp.max(jnp.abs(out - ref)))
    assert jnp.allclose(out, ref, atol=3e-2, rtol=3e-2), (
        f"mismatch vs reference (max abs err {max_err})")

    print("KERNEL_OK")
</pallas_src>

<mosaic_0001>
module attributes {stable_mosaic.version = 11 : i64} {
  func.func @mlp_combiner_kernel(%arg0: i32, %arg1: memref<8x256xbf16, #tpu.memory_space<vmem>>, %arg2: memref<256x128xbf16, #tpu.memory_space<vmem>>, %arg3: memref<1x128xf32, #tpu.memory_space<vmem>>, %arg4: memref<128x128xbf16, #tpu.memory_space<vmem>>, %arg5: memref<1x128xf32, #tpu.memory_space<vmem>>, %arg6: memref<8x128xf32, #tpu.memory_space<vmem>>) attributes {dimension_semantics = [#tpu.dimension_semantics<parallel>], iteration_bounds = array<i64: 1>, scalar_prefetch = 0 : i64, scratch_operands = 0 : i64, tpu.core_type = #tpu.core_type<tc>, window_params = [{transform_indices = @transform_0, window_bounds = array<i64: 8, 256>}, {pipeline_mode = #tpu.pipeline_mode<synchronous>, transform_indices = @transform_1, window_bounds = array<i64: 256, 128>}, {pipeline_mode = #tpu.pipeline_mode<synchronous>, transform_indices = @transform_2, window_bounds = array<i64: 1, 128>}, {pipeline_mode = #tpu.pipeline_mode<synchronous>, transform_indices = @transform_3, window_bounds = array<i64: 128, 128>}, {pipeline_mode = #tpu.pipeline_mode<synchronous>, transform_indices = @transform_4, window_bounds = array<i64: 1, 128>}, {transform_indices = @transform_5, window_bounds = array<i64: 8, 128>}]} {
    %c0 = arith.constant 0 : index
    %c0_0 = arith.constant 0 : index
    %0 = vector.load %arg1[%c0, %c0_0] : memref<8x256xbf16, #tpu.memory_space<vmem>>, vector<8x256xbf16>
    %c0_1 = arith.constant 0 : index
    %c0_2 = arith.constant 0 : index
    %1 = vector.load %arg2[%c0_1, %c0_2] : memref<256x128xbf16, #tpu.memory_space<vmem>>, vector<256x128xbf16>
    %cst = arith.constant dense<0.000000e+00> : vector<8x128xf32>
    %2 = tpu.matmul %0, %1, %cst {dimension_numbers = #tpu.dot_dimension_numbers<[1], [0], [0], [1], [0, 0, 1, 1], [], []>} : vector<8x256xbf16>, vector<256x128xbf16>, vector<8x128xf32> -> vector<8x128xf32>
    %c0_3 = arith.constant 0 : index
    %c0_4 = arith.constant 0 : index
    %3 = vector.load %arg3[%c0_3, %c0_4] : memref<1x128xf32, #tpu.memory_space<vmem>>, vector<1x128xf32>
    %4 = vector.broadcast %3 : vector<1x128xf32> to vector<8x128xf32>
    %5 = arith.addf %2, %4 : vector<8x128xf32>
    %6 = math.tanh %5 : vector<8x128xf32>
    %7 = arith.truncf %6 : vector<8x128xf32> to vector<8x128xbf16>
    %c0_5 = arith.constant 0 : index
    %c0_6 = arith.constant 0 : index
    %8 = vector.load %arg4[%c0_5, %c0_6] : memref<128x128xbf16, #tpu.memory_space<vmem>>, vector<128x128xbf16>
    %cst_7 = arith.constant dense<0.000000e+00> : vector<8x128xf32>
    %9 = tpu.matmul %7, %8, %cst_7 {dimension_numbers = #tpu.dot_dimension_numbers<[1], [0], [0], [1], [0, 0, 1, 1], [], []>} : vector<8x128xbf16>, vector<128x128xbf16>, vector<8x128xf32> -> vector<8x128xf32>
    %c0_8 = arith.constant 0 : index
    %c0_9 = arith.constant 0 : index
    %10 = vector.load %arg5[%c0_8, %c0_9] : memref<1x128xf32, #tpu.memory_space<vmem>>, vector<1x128xf32>
    %11 = vector.broadcast %10 : vector<1x128xf32> to vector<8x128xf32>
    %12 = arith.addf %9, %11 : vector<8x128xf32>
    %c0_10 = arith.constant 0 : index
    %c0_11 = arith.constant 0 : index
    %13 = vector.load %arg6[%c0_10, %c0_11] : memref<8x128xf32, #tpu.memory_space<vmem>>, vector<8x128xf32>
    tpu.vector_store %arg6[%c0_10, %c0_11], %12 {strides = array<i32>} : memref<8x128xf32, #tpu.memory_space<vmem>>, vector<8x128xf32>,
    return
  }
  func.func @transform_0(%arg0: i32) -> (i32, i32) {
    %c0_i32 = arith.constant 0 : i32
    %c0_i32_0 = arith.constant 0 : i32
    return %arg0, %c0_i32 : i32, i32
  }
  func.func @transform_1(%arg0: i32) -> (i32, i32) {
    %c0_i32 = arith.constant 0 : i32
    %c0_i32_0 = arith.constant 0 : i32
    %c0_i32_1 = arith.constant 0 : i32
    return %c0_i32, %c0_i32_0 : i32, i32
  }
  func.func @transform_2(%arg0: i32) -> (i32, i32) {
    %c0_i32 = arith.constant 0 : i32
    %c0_i32_0 = arith.constant 0 : i32
    %c0_i32_1 = arith.constant 0 : i32
    return %c0_i32, %c0_i32_0 : i32, i32
  }
  func.func @transform_3(%arg0: i32) -> (i32, i32) {
    %c0_i32 = arith.constant 0 : i32
    %c0_i32_0 = arith.constant 0 : i32
    %c0_i32_1 = arith.constant 0 : i32
    return %c0_i32, %c0_i32_0 : i32, i32
  }
  func.func @transform_4(%arg0: i32) -> (i32, i32) {
    %c0_i32 = arith.constant 0 : i32
    %c0_i32_0 = arith.constant 0 : i32
    %c0_i32_1 = arith.constant 0 : i32
    return %c0_i32, %c0_i32_0 : i32, i32
  }
  func.func @transform_5(%arg0: i32) -> (i32, i32) {
    %c0_i32 = arith.constant 0 : i32
    %c0_i32_0 = arith.constant 0 : i32
    return %arg0, %c0_i32 : i32, i32
  }
}

</mosaic_0001>

<llo_original>
// kernel: mlp_combiner_forward.1
$region0: #{mlp_combiner_forward.1}
  #allocation0 [shape = 'u32[]', space=smem, size = 0x4, offset = 0x4, fixed_abs, tag = 'smem constant byte address 0x4 - core index']
  #allocation1 [shape = 'u32[144,128]{1,0:T(1,128)}', space=vmem, size = 0x12000, scoped, tag = 'internal scratch']
  %s0 = inlined_call_operand.vmem [shape: bf16[8,256], index: 0, kind: input, shape index: {}]
  %s1 = inlined_call_operand.hbm [shape: bf16[256,128], index: 1, kind: input, shape index: {}]
  %s2 = inlined_call_operand.vmem [shape: f32[1,128], index: 2, kind: input, shape index: {}]
  %s3 = inlined_call_operand.vmem [shape: bf16[128,128], index: 3, kind: input, shape index: {}]
  %s4 = inlined_call_operand.vmem [shape: f32[1,128], index: 4, kind: input, shape index: {}]
  %s5 = inlined_call_operand.vmem [shape: f32[8,128], index: 5, kind: output, shape index: {}]
  %s6 = sld [smem:[#allocation0]]
  $region34: #{mlp_combiner_forward.1} parent=0
    _
  %s8 = ssub.s32 1, %s6
  %s9 = scalar_select 0, %s8, %s6
  $region1: #{mlp_combiner_forward.1} parent=0
    #allocation2 [shape = 'u8[65536]{0}', space=vmem, size = 0x10000, scoped, tag = 'input window, operand 1, single buffered']
    #allocation3 [shape = 's32[1]{0}', space=sflag, size = 0x4, scoped, tag = 'scoped memory for mlp_combiner_forward.1']
    %10 = vsyncpa [#allocation3], 0
    // Predicated region
    $region2: #{mlp_combiner_forward.1} parent=1 // pred_check
      _
    $region3: #{mlp_combiner_forward.1} parent=1 // pred_check_branch
      %12 = sbr.rel (0) target = $region5
    $region4: #{mlp_combiner_forward.1} parent=1 // pred_region
      _
    $region5: #{mlp_combiner_forward.1} parent=1 // pred_fallthru
      _
    // Predicated region
    $region6: #{mlp_combiner_forward.1} parent=1 // pred_check
      _
    $region7: #{mlp_combiner_forward.1} parent=1 // pred_check_branch
      %14 = sbr.rel (0) target = $region9
    $region8: #{mlp_combiner_forward.1} parent=1 // pred_region
      %s16 = ssub.s32 2048, 2048
      %17 = vsyncadd [#allocation3], %s16
      %s18 = sshll.u32 [#allocation2], 4
      %s19 = int_to_ptr.vmem [resolvable:$true] %s18
      %24 = dma.hbm_to_vmem [thread:$0]  %s1, 2048, %s19, [#allocation3], 64, 64, 4
    $region9: #{mlp_combiner_forward.1} parent=1 // pred_fallthru
      _
    // Predicated region
    $region10: #{mlp_combiner_forward.1} parent=1 // pred_check
      _
    $region11: #{mlp_combiner_forward.1} parent=1 // pred_check_branch
      %26 = sbr.rel (0) target = $region13
    $region12: #{mlp_combiner_forward.1} parent=1 // pred_region
      _
    $region13: #{mlp_combiner_forward.1} parent=1 // pred_fallthru
      _
    // Predicated region
    $region14: #{mlp_combiner_forward.1} parent=1 // pred_check
      _
    $region15: #{mlp_combiner_forward.1} parent=1 // pred_check_branch
      %28 = sbr.rel (0) target = $region17
    $region16: #{mlp_combiner_forward.1} parent=1 // pred_region
      _
    $region17: #{mlp_combiner_forward.1} parent=1 // pred_fallthru
      _
    // Predicated region
    $region18: #{mlp_combiner_forward.1} parent=1 // pred_check
      _
    $region19: #{mlp_combiner_forward.1} parent=1 // pred_check_branch
      %30 = sbr.rel (0) target = $region21
    $region20: #{mlp_combiner_forward.1} parent=1 // pred_region
      _
    $region21: #{mlp_combiner_forward.1} parent=1 // pred_fallthru
      _
    // Predicated region
    $region22: #{mlp_combiner_forward.1} parent=1 // pred_check
      _
    $region23: #{mlp_combiner_forward.1} parent=1 // pred_check_branch
      %32 = sbr.rel (0) target = $region25
    $region24: #{mlp_combiner_forward.1} parent=1 // pred_region
      %33 = dma.done [#allocation3], 2048
    $region25: #{mlp_combiner_forward.1} parent=1 // pred_fallthru
      _
    %v35 = vld [vmem:[%s0] sm:$0xff]
    %v36 = vld [vmem:[#allocation2] sm:$0xf]
    %v37 = vld [vmem:[#allocation2 + $0x4] sm:$0xf]
    %v38 = vld [vmem:[#allocation2 + $0x8] sm:$0xf]
    %v39 = vld [vmem:[#allocation2 + $0xc] sm:$0xf]
    %v40 = vld [vmem:[#allocation2 + $0x10] sm:$0xf]
    %v41 = vld [vmem:[#allocation2 + $0x14] sm:$0xf]
    %v42 = vld [vmem:[#allocation2 + $0x18] sm:$0xf]
    %v43 = vld [vmem:[#allocation2 + $0x1c] sm:$0xf]
    %v44 = vld [vmem:[#allocation2 + $0x20] sm:$0xf]
    %v45 = vld [vmem:[#allocation2 + $0x24] sm:$0xf]
    %v46 = vld [vmem:[#allocation2 + $0x28] sm:$0xf]
    %v47 = vld [vmem:[#allocation2 + $0x2c] sm:$0xf]
    %v48 = vld [vmem:[#allocation2 + $0x30] sm:$0xf]
    %v49 = vld [vmem:[#allocation2 + $0x34] sm:$0xf]
    %v50 = vld [vmem:[#allocation2 + $0x38] sm:$0xf]
    %v51 = vld [vmem:[#allocation2 + $0x3c] sm:$0xf]
    %v52 = vld [vmem:[#allocation2 + $0x40] sm:$0xf]
    %v53 = vld [vmem:[#allocation2 + $0x44] sm:$0xf]
    %v54 = vld [vmem:[#allocation2 + $0x48] sm:$0xf]
    %v55 = vld [vmem:[#allocation2 + $0x4c] sm:$0xf]
    %v56 = vld [vmem:[#allocation2 + $0x50] sm:$0xf]
    %v57 = vld [vmem:[#allocation2 + $0x54] sm:$0xf]
    %v58 = vld [vmem:[#allocation2 + $0x58] sm:$0xf]
    %v59 = vld [vmem:[#allocation2 + $0x5c] sm:$0xf]
    %v60 = vld [vmem:[#allocation2 + $0x60] sm:$0xf]
    %v61 = vld [vmem:[#allocation2 + $0x64] sm:$0xf]
    %v62 = vld [vmem:[#allocation2 + $0x68] sm:$0xf]
    %v63 = vld [vmem:[#allocation2 + $0x6c] sm:$0xf]
    %v64 = vld [vmem:[#allocation2 + $0x70] sm:$0xf]
    %v65 = vld [vmem:[#allocation2 + $0x74] sm:$0xf]
    %v66 = vld [vmem:[#allocation2 + $0x78] sm:$0xf]
    %v67 = vld [vmem:[#allocation2 + $0x7c] sm:$0xf]
    %v68 = vld [vmem:[%s2] sm:$0x1]
    %v70 = vlaneseq
    %v71 = vshrl.u32 %v70, 7
    %v72 = vsub.s32 0, %v71
    %v73 = vrot.slane %v68, %v72
    %v76 = vunpack.c.l.b16 %v35
    %v77 = vunpack.c.h.b16 %v35
    %v78 = vpack.c.b16 %v76, %v76
    %v79 = vpack.c.b16 %v77, %v77
    %v114 = vunpack.c.l.b16 %v36
    %v115 = vunpack.c.l.b16 %v37
    %v116 = vunpack.c.l.b16 %v38
    %v117 = vunpack.c.l.b16 %v39
    %v118 = vunpack.c.l.b16 %v40
    %v119 = vunpack.c.l.b16 %v41
    %v120 = vunpack.c.l.b16 %v42
    %v121 = vunpack.c.l.b16 %v43
    %v122 = vunpack.c.l.b16 %v44
    %v123 = vunpack.c.l.b16 %v45
    %v124 = vunpack.c.l.b16 %v46
    %v125 = vunpack.c.l.b16 %v47
    %v126 = vunpack.c.l.b16 %v48
    %v127 = vunpack.c.l.b16 %v49
    %v128 = vunpack.c.l.b16 %v50
    %v129 = vunpack.c.l.b16 %v51
    %v130 = vunpack.c.l.b16 %v52
    %v131 = vunpack.c.l.b16 %v53
    %v132 = vunpack.c.l.b16 %v54
    %v133 = vunpack.c.l.b16 %v55
    %v134 = vunpack.c.l.b16 %v56
    %v135 = vunpack.c.l.b16 %v57
    %v136 = vunpack.c.l.b16 %v58
    %v137 = vunpack.c.l.b16 %v59
    %v138 = vunpack.c.l.b16 %v60
    %v139 = vunpack.c.l.b16 %v61
    %v140 = vunpack.c.l.b16 %v62
    %v141 = vunpack.c.l.b16 %v63
    %v142 = vunpack.c.l.b16 %v64
    %v143 = vunpack.c.l.b16 %v65
    %v144 = vunpack.c.l.b16 %v66
    %v145 = vunpack.c.l.b16 %v67
    %v146 = vpack.c.b16 %v115, %v114
    %v147 = vpack.c.b16 %v117, %v116
    %v148 = vpack.c.b16 %v119, %v118
    %v149 = vpack.c.b16 %v121, %v120
    %v150 = vpack.c.b16 %v123, %v122
    %v151 = vpack.c.b16 %v125, %v124
    %v152 = vpack.c.b16 %v127, %v126
    %v153 = vpack.c.b16 %v129, %v128
    %v154 = vpack.c.b16 %v131, %v130
    %v155 = vpack.c.b16 %v133, %v132
    %v156 = vpack.c.b16 %v135, %v134
    %v157 = vpack.c.b16 %v137, %v136
    %v158 = vpack.c.b16 %v139, %v138
    %v159 = vpack.c.b16 %v141, %v140
    %v160 = vpack.c.b16 %v143, %v142
    %v161 = vpack.c.b16 %v145, %v144
    %178 = vmatprep.subr.bf16.mxu0 0
    %179 = vmatpush1.bf16.msra.mxu0 %v146
    %180 = vmatprep.subr.bf16.mxu0 0
    %181 = vmatpush1.bf16.msra.mxu0 %v147
    %182 = vmatprep.subr.bf16.mxu0 0
    %183 = vmatpush1.bf16.msra.mxu0 %v148
    %184 = vmatprep.subr.bf16.mxu0 0
    %185 = vmatpush1.bf16.msra.mxu0 %v149
    %186 = vmatprep.subr.bf16.mxu0 0
    %187 = vmatpush1.bf16.msra.mxu0 %v150
    %188 = vmatprep.subr.bf16.mxu0 0
    %189 = vmatpush1.bf16.msra.mxu0 %v151
    %190 = vmatprep.subr.bf16.mxu0 0
    %191 = vmatpush1.bf16.msra.mxu0 %v152
    %192 = vmatprep.subr.bf16.mxu0 0
    %193 = vmatpush1.bf16.msra.mxu0 %v153
    %194 = vmatprep.subr.bf16.mxu0 0
    %195 = vmatpush1.bf16.msra.mxu0 %v154
    %196 = vmatprep.subr.bf16.mxu0 0
    %197 = vmatpush1.bf16.msra.mxu0 %v155
    %198 = vmatprep.subr.bf16.mxu0 0
    %199 = vmatpush1.bf16.msra.mxu0 %v156
    %200 = vmatprep.subr.bf16.mxu0 0
    %201 = vmatpush1.bf16.msra.mxu0 %v157
    %202 = vmatprep.subr.bf16.mxu0 0
    %203 = vmatpush1.bf16.msra.mxu0 %v158
    %204 = vmatprep.subr.bf16.mxu0 0
    %205 = vmatpush1.bf16.msra.mxu0 %v159
    %206 = vmatprep.subr.bf16.mxu0 0
    %207 = vmatpush1.bf16.msra.mxu0 %v160
    %208 = vmatprep.subr.bf16.mxu0 0
    %209 = vmatpush1.bf16.msra.mxu0 %v161
    %210 = vmatprep.mubr.bf16.mxu0 %v79
    %211 = vmatmul.mubr.bf16.gmra.mrb[0].mxu0 %v78
    %v212 = vpop.f32.mrb[0].mxu0
    %v213 = vadd.f32 %v73, %v212
    %v214 = vpop.f32.mrb[0].mxu0
    %v215 = vpop.f32.mrb[0].mxu0
    %v216 = vpop.f32.mrb[0].mxu0
    %217 = vdwg.mxu0
    %v218 = vtanh.pop %v213
    %v219 = vpack.c.bf16 %v218, %v218
    %v220 = vld [vmem:[%s3] sm:$0xf]
    %v221 = vld [vmem:[%s3 + $0x4] sm:$0xf]
    %v222 = vld [vmem:[%s3 + $0x8] sm:$0xf]
    %v223 = vld [vmem:[%s3 + $0xc] sm:$0xf]
    %v224 = vld [vmem:[%s3 + $0x10] sm:$0xf]
    %v225 = vld [vmem:[%s3 + $0x14] sm:$0xf]
    %v226 = vld [vmem:[%s3 + $0x18] sm:$0xf]
    %v227 = vld [vmem:[%s3 + $0x1c] sm:$0xf]
    %v228 = vld [vmem:[%s3 + $0x20] sm:$0xf]
    %v229 = vld [vmem:[%s3 + $0x24] sm:$0xf]
    %v230 = vld [vmem:[%s3 + $0x28] sm:$0xf]
    %v231 = vld [vmem:[%s3 + $0x2c] sm:$0xf]
    %v232 = vld [vmem:[%s3 + $0x30] sm:$0xf]
    %v233 = vld [vmem:[%s3 + $0x34] sm:$0xf]
    %v234 = vld [vmem:[%s3 + $0x38] sm:$0xf]
    %v235 = vld [vmem:[%s3 + $0x3c] sm:$0xf]
    %v236 = vld [vmem:[%s4] sm:$0x1]
    %v238 = vlaneseq
    %v239 = vshrl.u32 %v238, 7
    %v240 = vsub.s32 0, %v239
    %v241 = vrot.slane %v236, %v240
    %v259 = vunpack.c.l.b16 %v220
    %v260 = vunpack.c.l.b16 %v221
    %v261 = vunpack.c.l.b16 %v222
    %v262 = vunpack.c.l.b16 %v223
    %v263 = vunpack.c.l.b16 %v224
    %v264 = vunpack.c.l.b16 %v225
    %v265 = vunpack.c.l.b16 %v226
    %v266 = vunpack.c.l.b16 %v227
    %v267 = vunpack.c.l.b16 %v228
    %v268 = vunpack.c.l.b16 %v229
    %v269 = vunpack.c.l.b16 %v230
    %v270 = vunpack.c.l.b16 %v231
    %v271 = vunpack.c.l.b16 %v232
    %v272 = vunpack.c.l.b16 %v233
    %v273 = vunpack.c.l.b16 %v234
    %v274 = vunpack.c.l.b16 %v235
    %v275 = vpack.c.b16 %v260, %v259
    %v276 = vpack.c.b16 %v262, %v261
    %v277 = vpack.c.b16 %v264, %v263
    %v278 = vpack.c.b16 %v266, %v265
    %v279 = vpack.c.b16 %v268, %v267
    %v280 = vpack.c.b16 %v270, %v269
    %v281 = vpack.c.b16 %v272, %v271
    %v282 = vpack.c.b16 %v274, %v273
    %291 = vmatprep.subr.bf16.mxu0 0
    %292 = vmatpush1.bf16.msra.mxu0 %v275
    %293 = vmatprep.subr.bf16.mxu0 0
    %294 = vmatpush1.bf16.msra.mxu0 %v276
    %295 = vmatprep.subr.bf16.mxu0 0
    %296 = vmatpush1.bf16.msra.mxu0 %v277
    %297 = vmatprep.subr.bf16.mxu0 0
    %298 = vmatpush1.bf16.msra.mxu0 %v278
    %299 = vmatprep.subr.bf16.mxu0 0
    %300 = vmatpush1.bf16.msra.mxu0 %v279
    %301 = vmatprep.subr.bf16.mxu0 0
    %302 = vmatpush1.bf16.msra.mxu0 %v280
    %303 = vmatprep.subr.bf16.mxu0 0
    %304 = vmatpush1.bf16.msra.mxu0 %v281
    %305 = vmatprep.subr.bf16.mxu0 0
    %306 = vmatpush1.bf16.msra.mxu0 %v282
    %307 = vmatprep.subr.bf16.mxu0 0
    %308 = vmatpush1.bf16.msra.mxu0 0
    %309 = vmatprep.subr.bf16.mxu0 0
    %310 = vmatpush1.bf16.msra.mxu0 0
    %311 = vmatprep.subr.bf16.mxu0 0
    %312 = vmatpush1.bf16.msra.mxu0 0
    %313 = vmatprep.subr.bf16.mxu0 0
    %314 = vmatpush1.bf16.msra.mxu0 0
    %315 = vmatprep.subr.bf16.mxu0 0
    %316 = vmatpush1.bf16.msra.mxu0 0
    %317 = vmatprep.subr.bf16.mxu0 0
    %318 = vmatpush1.bf16.msra.mxu0 0
    %319 = vmatprep.subr.bf16.mxu0 0
    %320 = vmatpush1.bf16.msra.mxu0 0
    %321 = vmatprep.subr.bf16.mxu0 0
    %322 = vmatpush1.bf16.msra.mxu0 0
    %323 = vmatprep.mubr.bf16.mxu0 0
    %324 = vmatmul.mubr.bf16.gmra.mrb[0].mxu0 %v219
    %v325 = vpop.f32.mrb[0].mxu0
    %v326 = vadd.f32 %v241, %v325
    %v327 = vpop.f32.mrb[0].mxu0
    %v328 = vpop.f32.mrb[0].mxu0
    %v329 = vpop.f32.mrb[0].mxu0
    %330 = vdwg.mxu0
    %331 = vst [vmem:[%s5] sm:$0xff] %v326
    // Predicated region
    $region26: #{mlp_combiner_forward.1} parent=1 // pred_check
      _
    $region27: #{mlp_combiner_forward.1} parent=1 // pred_check_branch
      %333 = sbr.rel (0) target = $region29
    $region28: #{mlp_combiner_forward.1} parent=1 // pred_region
      _
    $region29: #{mlp_combiner_forward.1} parent=1 // pred_fallthru
      _
    // Predicated region
    $region30: #{mlp_combiner_forward.1} parent=1 // pred_check
      _
    $region31: #{mlp_combiner_forward.1} parent=1 // pred_check_branch
      %335 = sbr.rel (0) target = $region33
    $region32: #{mlp_combiner_forward.1} parent=1 // pred_region
      _
    $region33: #{mlp_combiner_forward.1} parent=1 // pred_fallthru
      _
    %336 = vsyncpa [#allocation3], 1

</llo_original>
